<compile_context>
chip_gen: v7x
topology: tpu7x:2x2x1
jax: 0.10.0
libtpu: 0.0.40
codegen_flags: <defaults>
</compile_context>

<pallas_src>
import jax
import jax.numpy as jnp
from jax.experimental import pallas as pl
from jax.experimental.pallas import tpu as pltpu

_LANES = 128
# Rows of 128 lanes per block: 2048 * 128 * 4 B = 1 MiB per f32 block.
# Double-buffered input + output => ~4 MiB VMEM, well under every generation's
# default scoped limit (16 MiB v5e, 32 MiB v6e/v7x), so no vmem_limit override needed.
_BLOCK_ROWS = 2048


def _identity_kernel(x_ref, o_ref):
    # Hot path: straight VMEM tile copy. No compute, no scratch.
    o_ref[...] = x_ref[...]


def skip_connect(x: jax.Array) -> jax.Array:
    """SkipConnect.forward(x) == x.

    The true optimum for an identity is simply returning `x` (zero bytes moved);
    the Pallas path below exists so the op still flows through a kernel, made as
    cheap as possible via buffer aliasing + lane-dense tiled copy.
    """
    total = x.size

    if total % _LANES != 0:
        # Fallback (rare): whole flattened array as one block — always legal.
        flat = x.reshape(-1)
        out = pl.pallas_call(
            _identity_kernel,
            out_shape=jax.ShapeDtypeStruct(flat.shape, flat.dtype),
            in_specs=[pl.BlockSpec(flat.shape, lambda: (0,))],
            out_specs=pl.BlockSpec(flat.shape, lambda: (0,)),
            input_output_aliases={0: 0},
        )(flat)
        return out.reshape(x.shape)

    # Lane-dense 2D view: last dim = 128 (full vreg lanes, unmasked stores).
    n_rows = total // _LANES
    block_rows = min(_BLOCK_ROWS, n_rows)
    flat = x.reshape(n_rows, _LANES)
    grid = (pl.cdiv(n_rows, block_rows),)

    out = pl.pallas_call(
        _identity_kernel,
        out_shape=jax.ShapeDtypeStruct(flat.shape, flat.dtype),
        grid=grid,
        in_specs=[pl.BlockSpec((block_rows, _LANES), lambda i: (i, 0))],
        out_specs=pl.BlockSpec((block_rows, _LANES), lambda i: (i, 0)),
        input_output_aliases={0: 0},
        compiler_params=pltpu.CompilerParams(
            dimension_semantics=("parallel",),
        ),
    )(flat)
    return out.reshape(x.shape)


# Jit the wrapper so reshape-in / kernel / reshape-out fuse into one program.
skip_connect_jit = jax.jit(skip_connect)


if __name__ == "__main__":
    key = jax.random.PRNGKey(0)
    # NCHW input consistent with the module: batch=2, channels=4, spatial=16.
    x = jax.random.normal(key, (2, 4, 16, 16), dtype=jnp.float32)

    y = skip_connect_jit(x)
    y = jax.block_until_ready(y)

    assert y.shape == x.shape and y.dtype == x.dtype
    assert bool(jnp.all(y == x))
    print("KERNEL_OK")
</pallas_src>

<mosaic_0001>
module attributes {stable_mosaic.version = 11 : i64} {
  func.func @_identity_kernel(%arg0: i32, %arg1: memref<16x128xf32, #tpu.memory_space<vmem>>, %arg2: memref<16x128xf32, #tpu.memory_space<vmem>>) attributes {dimension_semantics = [#tpu.dimension_semantics<parallel>], iteration_bounds = array<i64: 1>, scalar_prefetch = 0 : i64, scratch_operands = 0 : i64, tpu.core_type = #tpu.core_type<tc>, window_params = [{transform_indices = @transform_0, window_bounds = array<i64: 16, 128>}, {transform_indices = @transform_1, window_bounds = array<i64: 16, 128>}]} {
    %c0 = arith.constant 0 : index
    %c0_0 = arith.constant 0 : index
    %0 = vector.load %arg1[%c0, %c0_0] : memref<16x128xf32, #tpu.memory_space<vmem>>, vector<16x128xf32>
    %c0_1 = arith.constant 0 : index
    %c0_2 = arith.constant 0 : index
    %1 = vector.load %arg2[%c0_1, %c0_2] : memref<16x128xf32, #tpu.memory_space<vmem>>, vector<16x128xf32>
    tpu.vector_store %arg2[%c0_1, %c0_2], %0 {strides = array<i32>} : memref<16x128xf32, #tpu.memory_space<vmem>>, vector<16x128xf32>,
    return
  }
  func.func @transform_0(%arg0: i32) -> (i32, i32) {
    %c0_i32 = arith.constant 0 : i32
    %c0_i32_0 = arith.constant 0 : i32
    return %arg0, %c0_i32 : i32, i32
  }
  func.func @transform_1(%arg0: i32) -> (i32, i32) {
    %c0_i32 = arith.constant 0 : i32
    %c0_i32_0 = arith.constant 0 : i32
    return %arg0, %c0_i32 : i32, i32
  }
}

</mosaic_0001>

<llo_original>
// kernel: skip_connect.1
$region0: #{skip_connect.1}
  #allocation0 [shape = 'u32[]', space=smem, size = 0x4, offset = 0x4, fixed_abs, tag = 'smem constant byte address 0x4 - core index']
  #allocation1 [shape = 'u32[144,128]{1,0:T(1,128)}', space=vmem, size = 0x12000, scoped, tag = 'internal scratch']
  %s0 = inlined_call_operand.vmem [shape: f32[16,128], index: 0, kind: input, shape index: {}, may-alias: {0,1}]
  %s1 = inlined_call_operand.vmem [shape: f32[16,128], index: 1, kind: output, shape index: {}, may-alias: {0,1}]
  %s2 = sld [smem:[#allocation0]]
  $region14: #{skip_connect.1} parent=0
    _
  %s4 = ssub.s32 1, %s2
  %s5 = scalar_select 0, %s4, %s2
  // Predicated region
  $region2: #{skip_connect.1} parent=0 // pred_check
    _
  $region3: #{skip_connect.1} parent=0 // pred_check_branch
    %7 = sbr.rel (0) target = $region5
  $region4: #{skip_connect.1} parent=0 // pred_region
    _
  $region5: #{skip_connect.1} parent=0 // pred_fallthru
    _
  %v8 = vld [vmem:[%s0] sm:$0xff]
  %v9 = vld [vmem:[%s0 + $0x8] sm:$0xff]
  %10 = vst [vmem:[%s1] sm:$0xff] %v8
  %11 = vst [vmem:[%s1 + $0x8] sm:$0xff] %v9
  // Predicated region
  $region6: #{skip_connect.1} parent=0 // pred_check
    _
  $region7: #{skip_connect.1} parent=0 // pred_check_branch
    %13 = sbr.rel (0) target = $region9
  $region8: #{skip_connect.1} parent=0 // pred_region
    _
  $region9: #{skip_connect.1} parent=0 // pred_fallthru
    _
  // Predicated region
  $region10: #{skip_connect.1} parent=0 // pred_check
    _
  $region11: #{skip_connect.1} parent=0 // pred_check_branch
    %15 = sbr.rel (0) target = $region13
  $region12: #{skip_connect.1} parent=0 // pred_region
    _
  $region13: #{skip_connect.1} parent=0 // pred_fallthru
    _

</llo_original>
